<compile_context>
chip_gen: v5e
topology: v5e:2x2
jax: 0.10.0
libtpu: 0.0.40
codegen_flags: <defaults>
</compile_context>

<pallas_src>
import functools

import jax
import jax.numpy as jnp
from jax.experimental import pallas as pl
from jax.experimental.pallas import tpu as pltpu


def _round_up(a, b):
    return ((a + b - 1) // b) * b


def _num_tensorcores():
    # Heuristic: v7x / v4 / v5p expose 2 TensorCores per chip; v5e / v6e have 1.
    try:
        kind = jax.devices()[0].device_kind.lower()
    except Exception:
        return 1
    if ("v7" in kind) or ("7x" in kind) or ("v4" in kind) or ("v5p" in kind):
        return 2
    return 1


# --------------------------------------------------------------------------
# Path 1: whole-row block kernel (one grid step handles `tn` full samples).
# --------------------------------------------------------------------------
def _ln_rowblock_kernel(x_ref, w_ref, b_ref, out_ref, mean_ref, std_ref, *, eps, inv_n):
    # x_ref block: (tn, C*HW); w_ref/b_ref: (1, C*HW) resident slabs.
    x = x_ref[...].astype(jnp.float32)

    # Two-pass statistics (matches torch: mean, then mean((x-mean)^2)); f32 accumulate.
    mean = jnp.sum(x, axis=-1, keepdims=True) * inv_n            # (tn, 1)
    xc = x - mean
    var = jnp.sum(xc * xc, axis=-1, keepdims=True) * inv_n       # (tn, 1)

    inv_std = jax.lax.rsqrt(var + eps)                           # EUP rsqrt on per-row scalar
    std = (var + eps) * inv_std                                  # == sqrt(var + eps)

    # Normalize + per-channel affine (params pre-broadcast to lane layout).
    out_ref[...] = (xc * inv_std * w_ref[...] + b_ref[...]).astype(out_ref.dtype)
    mean_ref[...] = mean.astype(mean_ref.dtype)
    std_ref[...] = std.astype(std_ref.dtype)


def _laynormal_rowblock(x2, w_flat, b_flat, eps, *, tn, vmem_limit):
    N, CHW = x2.shape
    grid_n = pl.cdiv(N, tn)
    kernel = functools.partial(_ln_rowblock_kernel, eps=eps, inv_n=1.0 / CHW)

    cost = pl.CostEstimate(
        flops=7 * N * CHW,
        transcendentals=N,
        bytes_accessed=2 * N * CHW * x2.dtype.itemsize + 2 * CHW * 4 + 8 * N,
    )

    out2, mean2, std2 = pl.pallas_call(
        kernel,
        out_shape=(
            jax.ShapeDtypeStruct((N, CHW), x2.dtype),
            jax.ShapeDtypeStruct((N, 1), jnp.float32),
            jax.ShapeDtypeStruct((N, 1), jnp.float32),
        ),
        grid_spec=pltpu.PrefetchScalarGridSpec(
            num_scalar_prefetch=0,
            grid=(grid_n,),
            in_specs=[
                pl.BlockSpec((tn, CHW), lambda i: (i, 0)),   # x rows
                pl.BlockSpec((1, CHW), lambda i: (0, 0)),    # weight (resident)
                pl.BlockSpec((1, CHW), lambda i: (0, 0)),    # bias   (resident)
            ],
            out_specs=[
                pl.BlockSpec((tn, CHW), lambda i: (i, 0)),   # out rows
                pl.BlockSpec((tn, 1), lambda i: (i, 0)),     # mean
                pl.BlockSpec((tn, 1), lambda i: (i, 0)),     # std
            ],
        ),
        compiler_params=pltpu.CompilerParams(
            dimension_semantics=("parallel",),
            vmem_limit_bytes=int(vmem_limit),
        ),
        cost_estimate=cost,
    )(x2, w_flat, b_flat)
    return out2, mean2, std2


# --------------------------------------------------------------------------
# Path 2: HW-tiled fallback (samples too large for a whole-row VMEM block).
#   Kernel A: tiled single-pass stats reduction (accumulator pattern).
#   Kernel B: tiled normalize + affine.
# --------------------------------------------------------------------------
def _ln_stats_kernel(x_ref, mean_ref, std_ref, s_acc, s2_acc, *, eps, inv_n):
    j = pl.program_id(1)

    @pl.when(j == 0)
    def _():
        s_acc[...] = jnp.zeros_like(s_acc)
        s2_acc[...] = jnp.zeros_like(s2_acc)

    x = x_ref[...].astype(jnp.float32)
    s_acc[...] += jnp.sum(x, axis=-1, keepdims=True)
    s2_acc[...] += jnp.sum(x * x, axis=-1, keepdims=True)

    @pl.when(j == pl.num_programs(1) - 1)
    def _():
        mean = s_acc[...] * inv_n
        # Single-pass variance (E[x^2] - mean^2) with a cancellation clamp; the data is
        # streamed once so a second sweep would double HBM traffic on this path.
        var = jnp.maximum(s2_acc[...] * inv_n - mean * mean, 0.0)
        inv_std = jax.lax.rsqrt(var + eps)
        mean_ref[...] = mean
        std_ref[...] = (var + eps) * inv_std


def _ln_norm_kernel(x_ref, w_ref, b_ref, mean_ref, std_ref, out_ref):
    x = x_ref[...].astype(jnp.float32)
    inv_std = 1.0 / std_ref[...]                                  # (tn, 1) — cheap
    out_ref[...] = ((x - mean_ref[...]) * inv_std * w_ref[...] + b_ref[...]).astype(out_ref.dtype)


def _laynormal_tiled(x2, w_flat, b_flat, eps, *, tn, tc, vmem_limit):
    N, CHW = x2.shape
    chw_pad = _round_up(CHW, tc)
    if chw_pad != CHW:
        # Zero-pad the lane axis so the reduction over C*HW tiles never sees garbage
        # boundary lanes (zeros are exact for sum / sum-of-squares); padded output
        # lanes are sliced off below.  inv_n below uses the *real* CHW.
        pad = chw_pad - CHW
        x2 = jnp.pad(x2, ((0, 0), (0, pad)))
        w_flat = jnp.pad(w_flat, ((0, 0), (0, pad)))
        b_flat = jnp.pad(b_flat, ((0, 0), (0, pad)))
    n_ct = chw_pad // tc
    grid_n = pl.cdiv(N, tn)

    stats_kernel = functools.partial(_ln_stats_kernel, eps=eps, inv_n=1.0 / CHW)
    mean2, std2 = pl.pallas_call(
        stats_kernel,
        out_shape=(
            jax.ShapeDtypeStruct((N, 1), jnp.float32),
            jax.ShapeDtypeStruct((N, 1), jnp.float32),
        ),
        grid_spec=pltpu.PrefetchScalarGridSpec(
            num_scalar_prefetch=0,
            grid=(grid_n, n_ct),
            in_specs=[pl.BlockSpec((tn, tc), lambda i, j: (i, j))],
            out_specs=[
                pl.BlockSpec((tn, 1), lambda i, j: (i, 0)),
                pl.BlockSpec((tn, 1), lambda i, j: (i, 0)),
            ],
            scratch_shapes=[
                pltpu.VMEM((tn, 1), jnp.float32),
                pltpu.VMEM((tn, 1), jnp.float32),
            ],
        ),
        compiler_params=pltpu.CompilerParams(
            dimension_semantics=("parallel", "arbitrary"),
            vmem_limit_bytes=int(vmem_limit),
        ),
    )(x2)

    out2 = pl.pallas_call(
        _ln_norm_kernel,
        out_shape=jax.ShapeDtypeStruct((N, chw_pad), x2.dtype),
        grid_spec=pltpu.PrefetchScalarGridSpec(
            num_scalar_prefetch=0,
            grid=(grid_n, n_ct),
            in_specs=[
                pl.BlockSpec((tn, tc), lambda i, j: (i, j)),
                pl.BlockSpec((1, tc), lambda i, j: (0, j)),
                pl.BlockSpec((1, tc), lambda i, j: (0, j)),
                pl.BlockSpec((tn, 1), lambda i, j: (i, 0)),
                pl.BlockSpec((tn, 1), lambda i, j: (i, 0)),
            ],
            out_specs=pl.BlockSpec((tn, tc), lambda i, j: (i, j)),
        ),
        compiler_params=pltpu.CompilerParams(
            dimension_semantics=("parallel", "parallel"),
            vmem_limit_bytes=int(vmem_limit),
        ),
    )(x2, w_flat, b_flat, mean2, std2)

    if chw_pad != CHW:
        out2 = out2[:, :CHW]
    return out2, mean2, std2


# --------------------------------------------------------------------------
# Public forward.
# --------------------------------------------------------------------------
def laynormal_forward(x, weight, bias, meta1_w, meta1_b, meta2_w, meta2_b, eps=1e-5):
    """x: (N, C, H, W). Returns (out, rescale, rebias) matching the PyTorch module."""
    N, C, H, W = x.shape
    HW = H * W
    CHW = C * HW

    # Flat 2-D layout; per-channel params broadcast once to lane layout (f32).
    x2 = x.reshape(N, CHW)
    w_flat = jnp.broadcast_to(weight.reshape(C, 1).astype(jnp.float32), (C, HW)).reshape(1, CHW)
    b_flat = jnp.broadcast_to(bias.reshape(C, 1).astype(jnp.float32), (C, HW)).reshape(1, CHW)

    # ---- padding-aware VMEM budgeting (generation aware) ------------------
    itemsize = x.dtype.itemsize
    try:
        phys_vmem = pltpu.get_tpu_info().vmem_capacity_bytes
    except Exception:
        phys_vmem = 64 * 1024 * 1024          # v7x-safe default (64 MiB per TensorCore)
    vmem_limit = int(min(phys_vmem * 3 // 4, 100 * 1024 * 1024))
    budget = vmem_limit - 4 * 1024 * 1024     # headroom for Mosaic internal scratch

    chw_row_bytes = CHW * itemsize
    # (1, C*HW) params pad to 8 sublanes; count them (conservatively) double-buffered.
    param_bytes = 2 * 2 * 8 * CHW * 4
    avail = budget - param_bytes
    # x block + out block, each double-buffered; rows pad to a multiple of 8.
    max_rows = (avail // (4 * chw_row_bytes)) if avail > 0 else 0

    cores = _num_tensorcores()

    if max_rows >= 8:
        # Whole-sample rows fit: single-kernel path.
        if N <= max_rows:
            tn = N                                          # block dim == full array dim
        else:
            tn = min((max_rows // 8) * 8, _round_up(N, 8))  # multiple of 8
        if cores >= 2 and N >= 16 and pl.cdiv(N, tn) < 2:
            # Only on multi-TensorCore chips: ensure >= 2 grid steps so both cores work.
            tn = _round_up(pl.cdiv(N, 2), 8)
        out2, mean2, std2 = _laynormal_rowblock(
            x2, w_flat, b_flat, eps, tn=tn, vmem_limit=vmem_limit)
    else:
        # Sample too large for a whole-row block: HW-tiled two-kernel path.
        tn_t = N if N < 8 else 8
        rows_pad = _round_up(tn_t, 8)
        per_lane_bytes = 4 * rows_pad * itemsize + 4 * 8 * 4   # x/out blocks + w/b tiles
        tc = max(128, min(((budget // per_lane_bytes) // 128) * 128,
                          _round_up(CHW, 128)))
        out2, mean2, std2 = _laynormal_tiled(
            x2, w_flat, b_flat, eps, tn=tn_t, tc=tc, vmem_limit=vmem_limit)

    out = out2.reshape(N, C, H, W)

    # meta1/meta2 are Conv2d(1, dim, 1) applied to the (N,1,1,1) std / mean: a tiny
    # O(N*C) affine, done in plain jnp (keeps masked sub-128-lane stores and four extra
    # resident param blocks out of the kernel pipeline).
    mean4 = mean2.reshape(N, 1, 1, 1)
    std4 = std2.reshape(N, 1, 1, 1)
    rescale = std4 * meta1_w.reshape(1, C, 1, 1).astype(jnp.float32) \
        + meta1_b.reshape(1, C, 1, 1).astype(jnp.float32)
    rebias = mean4 * meta2_w.reshape(1, C, 1, 1).astype(jnp.float32) \
        + meta2_b.reshape(1, C, 1, 1).astype(jnp.float32)
    # TODO(synk): detach_grad only affects autograd; this is a forward-only kernel.
    return out, rescale, rebias


# --------------------------------------------------------------------------
# Init + reference + self-test.
# --------------------------------------------------------------------------
def init_params(dim, key):
    """Deterministic init mirroring the PyTorch __init__ (synthetic weights)."""
    k1, k2 = jax.random.split(key)
    weight = jnp.ones((dim,), jnp.float32)                 # nn.Parameter ones (1,dim,1,1)
    bias = jnp.zeros((dim,), jnp.float32)                  # nn.Parameter zeros (1,dim,1,1)
    meta1_w = 0.02 * jax.random.truncated_normal(k1, -2.0, 2.0, (dim,), jnp.float32)
    meta1_b = jnp.ones((dim,), jnp.float32)                # constant_(meta1.bias, 1)
    meta2_w = 0.02 * jax.random.truncated_normal(k2, -2.0, 2.0, (dim,), jnp.float32)
    meta2_b = jnp.zeros((dim,), jnp.float32)               # constant_(meta2.bias, 0)
    return weight, bias, meta1_w, meta1_b, meta2_w, meta2_b


def _reference(x, weight, bias, w1, b1, w2, b2, eps=1e-5):
    mean = jnp.mean(x, axis=(1, 2, 3), keepdims=True)
    std = jnp.sqrt(jnp.mean((x - mean) ** 2, axis=(1, 2, 3), keepdims=True) + eps)
    xn = (x - mean) / std
    out = xn * weight.reshape(1, -1, 1, 1) + bias.reshape(1, -1, 1, 1)
    rescale = std * w1.reshape(1, -1, 1, 1) + b1.reshape(1, -1, 1, 1)
    rebias = mean * w2.reshape(1, -1, 1, 1) + b2.reshape(1, -1, 1, 1)
    return out, rescale, rebias


if __name__ == "__main__":
    key = jax.random.PRNGKey(0)
    kx, kp = jax.random.split(key)

    N, C, H, W = 2, 4, 16, 16
    x = jax.random.normal(kx, (N, C, H, W), jnp.float32)
    params = init_params(C, kp)

    out, rescale, rebias = laynormal_forward(x, *params, eps=1e-5)
    jax.block_until_ready((out, rescale, rebias))

    out_r, rescale_r, rebias_r = _reference(x, *params, eps=1e-5)
    assert jnp.allclose(out, out_r, atol=2e-5, rtol=2e-5)
    assert jnp.allclose(rescale, rescale_r, atol=2e-5, rtol=2e-5)
    assert jnp.allclose(rebias, rebias_r, atol=2e-5, rtol=2e-5)

    # Also exercise the HW-tiled fallback path (used when a whole sample does not fit
    # in VMEM) at a small shape, so both code paths are validated on TPU.
    HW = H * W
    x2 = x.reshape(N, C * HW)
    w_flat = jnp.broadcast_to(params[0].reshape(C, 1), (C, HW)).reshape(1, C * HW).astype(jnp.float32)
    b_flat = jnp.broadcast_to(params[1].reshape(C, 1), (C, HW)).reshape(1, C * HW).astype(jnp.float32)
    out2_t, mean_t, std_t = _laynormal_tiled(
        x2, w_flat, b_flat, 1e-5, tn=N, tc=256, vmem_limit=48 * 1024 * 1024)
    jax.block_until_ready((out2_t, mean_t, std_t))
    out_t = out2_t.reshape(N, C, H, W)
    mean_r = jnp.mean(x, axis=(1, 2, 3))
    std_r = jnp.sqrt(jnp.mean((x - mean_r.reshape(N, 1, 1, 1)) ** 2, axis=(1, 2, 3)) + 1e-5)
    assert jnp.allclose(out_t, out_r, atol=2e-4, rtol=2e-4)
    assert jnp.allclose(mean_t.reshape(N), mean_r, atol=2e-5, rtol=2e-5)
    assert jnp.allclose(std_t.reshape(N), std_r, atol=2e-4, rtol=2e-4)

    print("KERNEL_OK")
</pallas_src>

<mosaic_0001>
module attributes {stable_mosaic.version = 11 : i64} {
  func.func @_ln_rowblock_kernel(%arg0: i32, %arg1: memref<2x1024xf32, #tpu.memory_space<vmem>>, %arg2: memref<1x1024xf32, #tpu.memory_space<vmem>>, %arg3: memref<1x1024xf32, #tpu.memory_space<vmem>>, %arg4: memref<2x1024xf32, #tpu.memory_space<vmem>>, %arg5: memref<2x1xf32, #tpu.memory_space<vmem>>, %arg6: memref<2x1xf32, #tpu.memory_space<vmem>>) attributes {dimension_semantics = [#tpu.dimension_semantics<parallel>], iteration_bounds = array<i64: 1>, scalar_prefetch = 0 : i64, scratch_operands = 0 : i64, tpu.core_type = #tpu.core_type<tc>, window_params = [{transform_indices = @transform_0, window_bounds = array<i64: 2, 1024>}, {pipeline_mode = #tpu.pipeline_mode<synchronous>, transform_indices = @transform_1, window_bounds = array<i64: 1, 1024>}, {pipeline_mode = #tpu.pipeline_mode<synchronous>, transform_indices = @transform_2, window_bounds = array<i64: 1, 1024>}, {transform_indices = @transform_3, window_bounds = array<i64: 2, 1024>}, {transform_indices = @transform_4, window_bounds = array<i64: 2, 1>}, {transform_indices = @transform_5, window_bounds = array<i64: 2, 1>}]} {
    %c0 = arith.constant 0 : index
    %c0_0 = arith.constant 0 : index
    %0 = vector.load %arg1[%c0, %c0_0] : memref<2x1024xf32, #tpu.memory_space<vmem>>, vector<2x1024xf32>
    %cst = arith.constant dense<0.000000e+00> : vector<2xf32>
    %1 = vector.multi_reduction <add>, %0, %cst [1] : vector<2x1024xf32> to vector<2xf32>
    %2 = vector.shape_cast %1 : vector<2xf32> to vector<2x1xf32>
    %cst_1 = arith.constant 9.765625E-4 : f32
    %3 = vector.broadcast %cst_1 : f32 to vector<2x1xf32>
    %4 = arith.mulf %2, %3 : vector<2x1xf32>
    %5 = vector.broadcast %4 : vector<2x1xf32> to vector<2x1024xf32>
    %6 = arith.subf %0, %5 : vector<2x1024xf32>
    %7 = arith.mulf %6, %6 : vector<2x1024xf32>
    %cst_2 = arith.constant dense<0.000000e+00> : vector<2xf32>
    %8 = vector.multi_reduction <add>, %7, %cst_2 [1] : vector<2x1024xf32> to vector<2xf32>
    %9 = vector.shape_cast %8 : vector<2xf32> to vector<2x1xf32>
    %cst_3 = arith.constant 9.765625E-4 : f32
    %10 = vector.broadcast %cst_3 : f32 to vector<2x1xf32>
    %11 = arith.mulf %9, %10 : vector<2x1xf32>
    %cst_4 = arith.constant 9.99999974E-6 : f32
    %12 = vector.broadcast %cst_4 : f32 to vector<2x1xf32>
    %13 = arith.addf %11, %12 : vector<2x1xf32>
    %14 = math.rsqrt %13 : vector<2x1xf32>
    %cst_5 = arith.constant 9.99999974E-6 : f32
    %15 = vector.broadcast %cst_5 : f32 to vector<2x1xf32>
    %16 = arith.addf %11, %15 : vector<2x1xf32>
    %17 = arith.mulf %16, %14 : vector<2x1xf32>
    %18 = vector.broadcast %14 : vector<2x1xf32> to vector<2x1024xf32>
    %19 = arith.mulf %6, %18 : vector<2x1024xf32>
    %c0_6 = arith.constant 0 : index
    %c0_7 = arith.constant 0 : index
    %20 = vector.load %arg2[%c0_6, %c0_7] : memref<1x1024xf32, #tpu.memory_space<vmem>>, vector<1x1024xf32>
    %21 = vector.broadcast %20 : vector<1x1024xf32> to vector<2x1024xf32>
    %22 = arith.mulf %19, %21 : vector<2x1024xf32>
    %c0_8 = arith.constant 0 : index
    %c0_9 = arith.constant 0 : index
    %23 = vector.load %arg3[%c0_8, %c0_9] : memref<1x1024xf32, #tpu.memory_space<vmem>>, vector<1x1024xf32>
    %24 = vector.broadcast %23 : vector<1x1024xf32> to vector<2x1024xf32>
    %25 = arith.addf %22, %24 : vector<2x1024xf32>
    %c0_10 = arith.constant 0 : index
    %c0_11 = arith.constant 0 : index
    %26 = vector.load %arg4[%c0_10, %c0_11] : memref<2x1024xf32, #tpu.memory_space<vmem>>, vector<2x1024xf32>
    tpu.vector_store %arg4[%c0_10, %c0_11], %25 {strides = array<i32>} : memref<2x1024xf32, #tpu.memory_space<vmem>>, vector<2x1024xf32>,
    %c0_12 = arith.constant 0 : index
    %c0_13 = arith.constant 0 : index
    %27 = vector.load %arg5[%c0_12, %c0_13] : memref<2x1xf32, #tpu.memory_space<vmem>>, vector<2x1xf32>
    tpu.vector_store %arg5[%c0_12, %c0_13], %4 {strides = array<i32>} : memref<2x1xf32, #tpu.memory_space<vmem>>, vector<2x1xf32>,
    %c0_14 = arith.constant 0 : index
    %c0_15 = arith.constant 0 : index
    %28 = vector.load %arg6[%c0_14, %c0_15] : memref<2x1xf32, #tpu.memory_space<vmem>>, vector<2x1xf32>
    tpu.vector_store %arg6[%c0_14, %c0_15], %17 {strides = array<i32>} : memref<2x1xf32, #tpu.memory_space<vmem>>, vector<2x1xf32>,
    return
  }
  func.func @transform_0(%arg0: i32) -> (i32, i32) {
    %c0_i32 = arith.constant 0 : i32
    %c0_i32_0 = arith.constant 0 : i32
    return %arg0, %c0_i32 : i32, i32
  }
  func.func @transform_1(%arg0: i32) -> (i32, i32) {
    %c0_i32 = arith.constant 0 : i32
    %c0_i32_0 = arith.constant 0 : i32
    %c0_i32_1 = arith.constant 0 : i32
    return %c0_i32, %c0_i32_0 : i32, i32
  }
  func.func @transform_2(%arg0: i32) -> (i32, i32) {
    %c0_i32 = arith.constant 0 : i32
    %c0_i32_0 = arith.constant 0 : i32
    %c0_i32_1 = arith.constant 0 : i32
    return %c0_i32, %c0_i32_0 : i32, i32
  }
  func.func @transform_3(%arg0: i32) -> (i32, i32) {
    %c0_i32 = arith.constant 0 : i32
    %c0_i32_0 = arith.constant 0 : i32
    return %arg0, %c0_i32 : i32, i32
  }
  func.func @transform_4(%arg0: i32) -> (i32, i32) {
    %c0_i32 = arith.constant 0 : i32
    %c0_i32_0 = arith.constant 0 : i32
    return %arg0, %c0_i32 : i32, i32
  }
  func.func @transform_5(%arg0: i32) -> (i32, i32) {
    %c0_i32 = arith.constant 0 : i32
    %c0_i32_0 = arith.constant 0 : i32
    return %arg0, %c0_i32 : i32, i32
  }
}

</mosaic_0001>

<llo_original>
// kernel: tpu_custom_call.1
$region0: #{tpu_custom_call.1}
  #allocation0 [shape = 'u32[]', space=smem, size = 0x4, offset = 0x4, fixed_abs, tag = 'smem constant byte address 0x4 - core index']
  #allocation1 [shape = 'u32[72,128]{1,0:T(1,128)}', space=vmem, size = 0x9000, scoped, tag = 'internal scratch']
  %s0 = inlined_call_operand.hbm [shape: f32[2,1024], index: 0, kind: input, shape index: {}]
  %s1 = inlined_call_operand.hbm [shape: f32[1,1024], index: 1, kind: input, shape index: {}]
  %s2 = inlined_call_operand.hbm [shape: f32[1,1024], index: 2, kind: input, shape index: {}]
  %s3 = inlined_call_operand.hbm [shape: f32[2,1024], index: 3, kind: output, shape index: {0}]
  %s4 = inlined_call_operand.vmem [shape: f32[2,1], index: 4, kind: output, shape index: {1}]
  %s5 = inlined_call_operand.vmem [shape: f32[2,1], index: 5, kind: output, shape index: {2}]
  %6 = xla_tuple %s3, %s4, %s5
  %s7 = sld [smem:[#allocation0]]
  $region50: #{tpu_custom_call.1} parent=0
    _
  %s9 = ssub.s32 1, %s7
  %s10 = scalar_select 0, %s9, %s7
  $region1: #{tpu_custom_call.1} parent=0
    #allocation2 [shape = 'u8[8192]{0}', space=vmem, size = 0x2000, scoped, tag = 'input window, operand 0, single buffered']
    #allocation3 [shape = 's32[1]{0}', space=sflag, size = 0x4, scoped, tag = 'scoped memory for tpu_custom_call.1']
    #allocation4 [shape = 's32[1]{0}', space=sflag, size = 0x4, scoped, tag = 'scoped memory for tpu_custom_call.1']
    #allocation5 [shape = 'u8[4096]{0}', space=vmem, size = 0x1000, scoped, tag = 'input window, operand 1, single buffered']
    #allocation6 [shape = 's32[1]{0}', space=sflag, size = 0x4, scoped, tag = 'scoped memory for tpu_custom_call.1']
    #allocation7 [shape = 'u8[4096]{0}', space=vmem, size = 0x1000, scoped, tag = 'input window, operand 2, single buffered']
    #allocation8 [shape = 'u8[8192]{0}', space=vmem, size = 0x2000, scoped, tag = 'output window, operand 0, single buffered']
    %11 = vsyncpa [#allocation3], 0
    %12 = vsyncpa [#allocation6], 0
    %13 = vsyncpa [#allocation4], 0
    // Predicated region
    $region2: #{tpu_custom_call.1} parent=1 // pred_check
      _
    $region3: #{tpu_custom_call.1} parent=1 // pred_check_branch
      %15 = sbr.rel (0) target = $region5
    $region4: #{tpu_custom_call.1} parent=1 // pred_region
      %17 = vsyncadd [#allocation3], 0
      %s19 = sshll.u32 %s0, 4
      %s20 = int_to_ptr.hbm [resolvable:$true] %s19
      %s21 = sshll.u32 [#allocation2], 4
      %s22 = int_to_ptr.vmem [resolvable:$true] %s21
      %24 = dma.hbm_to_vmem [thread:$0]  %s20, 256, %s22, [#allocation3]
    $region5: #{tpu_custom_call.1} parent=1 // pred_fallthru
      _
    // Predicated region
    $region6: #{tpu_custom_call.1} parent=1 // pred_check
      _
    $region7: #{tpu_custom_call.1} parent=1 // pred_check_branch
      %26 = sbr.rel (0) target = $region9
    $region8: #{tpu_custom_call.1} parent=1 // pred_region
      %28 = vsyncadd [#allocation6], 0
      %s30 = sshll.u32 %s1, 4
      %s31 = int_to_ptr.hbm [resolvable:$true] %s30
      %s32 = sshll.u32 [#allocation5], 4
      %s33 = int_to_ptr.vmem [resolvable:$true] %s32
      %35 = dma.hbm_to_vmem [thread:$0]  %s31, 128, %s33, [#allocation6]
    $region9: #{tpu_custom_call.1} parent=1 // pred_fallthru
      _
    // Predicated region
    $region10: #{tpu_custom_call.1} parent=1 // pred_check
      _
    $region11: #{tpu_custom_call.1} parent=1 // pred_check_branch
      %37 = sbr.rel (0) target = $region13
    $region12: #{tpu_custom_call.1} parent=1 // pred_region
      %39 = vsyncadd [#allocation6], 0
      %s41 = sshll.u32 %s2, 4
      %s42 = int_to_ptr.hbm [resolvable:$true] %s41
      %s43 = sshll.u32 [#allocation7], 4
      %s44 = int_to_ptr.vmem [resolvable:$true] %s43
      %46 = dma.hbm_to_vmem [thread:$0]  %s42, 128, %s44, [#allocation6]
    $region13: #{tpu_custom_call.1} parent=1 // pred_fallthru
      _
    // Predicated region
    $region14: #{tpu_custom_call.1} parent=1 // pred_check
      _
    $region15: #{tpu_custom_call.1} parent=1 // pred_check_branch
      %48 = sbr.rel (0) target = $region17
    $region16: #{tpu_custom_call.1} parent=1 // pred_region
      %50 = dma.done [#allocation3], 256
    $region17: #{tpu_custom_call.1} parent=1 // pred_fallthru
      _
    // Predicated region
    $region18: #{tpu_custom_call.1} parent=1 // pred_check
      _
    $region19: #{tpu_custom_call.1} parent=1 // pred_check_branch
      %52 = sbr.rel (0) target = $region21
    $region20: #{tpu_custom_call.1} parent=1 // pred_region
      %54 = dma.done [#allocation6], 128
    $region21: #{tpu_custom_call.1} parent=1 // pred_fallthru
      _
    // Predicated region
    $region22: #{tpu_custom_call.1} parent=1 // pred_check
      _
    $region23: #{tpu_custom_call.1} parent=1 // pred_check_branch
      %56 = sbr.rel (0) target = $region25
    $region24: #{tpu_custom_call.1} parent=1 // pred_region
      %58 = dma.done [#allocation6], 128
    $region25: #{tpu_custom_call.1} parent=1 // pred_fallthru
      _
    %v59 = vld [vmem:[#allocation2] sm:$0xff]
    %v60 = vld [vmem:[#allocation2 + $0x8] sm:$0xff]
    %63 = vst [vmem:[#allocation1] ss:$4 sm:$0xff] %v59
    %s64 = scalar_lea.vmem [#allocation1], 32
    %65 = vst [vmem:[%s64] ss:$4 sm:$0xff] %v60
    %v66 = vld.sshfl [vmem:[#allocation1] sm:$0xff pattern:$0x73625140]
    %v67 = vld.sshfl [vmem:[#allocation1 + $0x8] sm:$0xff pattern:$0x73625140]
    %v68 = vld.sshfl [vmem:[#allocation1 + $0x10] sm:$0xff pattern:$0x73625140]
    %v69 = vld.sshfl [vmem:[#allocation1 + $0x18] sm:$0xff pattern:$0x73625140]
    %v70 = vld.sshfl [vmem:[#allocation1 + $0x20] sm:$0xff pattern:$0x73625140]
    %v71 = vld.sshfl [vmem:[#allocation1 + $0x28] sm:$0xff pattern:$0x73625140]
    %v72 = vld.sshfl [vmem:[#allocation1 + $0x30] sm:$0xff pattern:$0x73625140]
    %v73 = vld.sshfl [vmem:[#allocation1 + $0x38] sm:$0xff pattern:$0x73625140]
    %vm82 = vcmask 1041408
    %v83 = vsel %vm82, %v66, 0.0
    %v84 = vsel %vm82, %v67, 0.0
    %v85 = vadd.f32 %v83, %v84
    %v86 = vsel %vm82, %v68, 0.0
    %v87 = vadd.f32 %v85, %v86
    %v88 = vsel %vm82, %v69, 0.0
    %v89 = vadd.f32 %v87, %v88
    %v90 = vsel %vm82, %v70, 0.0
    %v91 = vadd.f32 %v89, %v90
    %v92 = vsel %vm82, %v71, 0.0
    %v93 = vadd.f32 %v91, %v92
    %v94 = vsel %vm82, %v72, 0.0
    %v95 = vadd.f32 %v93, %v94
    %v96 = vsel %vm82, %v73, 0.0
    %v97 = vadd.f32 %v95, %v96
    %98 = vadd.xlane.f32.xlu0 %v97
    %v99 = vpop.xlane.xlu0 %98
    %v100 = vmul.f32 %v99, 0.0009765625
    %v103 = vunpack.c.l.s4 269488144
    %v104 = vunpack.c.0.s8 %v103
    %v105 = vperm.slane %v100, %v104
    %v107 = vsub.f32 %v59, %v105
    %v108 = vsub.f32 %v60, %v105
    %v109 = vmul.f32 %v107, %v107
    %v110 = vmul.f32 %v108, %v108
    %113 = vst [vmem:[#allocation1] ss:$4 sm:$0xff] %v109
    %s114 = scalar_lea.vmem [#allocation1], 32
    %115 = vst [vmem:[%s114] ss:$4 sm:$0xff] %v110
    %v116 = vld.sshfl [vmem:[#allocation1] sm:$0xff pattern:$0x73625140]
    %v117 = vld.sshfl [vmem:[#allocation1 + $0x8] sm:$0xff pattern:$0x73625140]
    %v118 = vld.sshfl [vmem:[#allocation1 + $0x10] sm:$0xff pattern:$0x73625140]
    %v119 = vld.sshfl [vmem:[#allocation1 + $0x18] sm:$0xff pattern:$0x73625140]
    %v120 = vld.sshfl [vmem:[#allocation1 + $0x20] sm:$0xff pattern:$0x73625140]
    %v121 = vld.sshfl [vmem:[#allocation1 + $0x28] sm:$0xff pattern:$0x73625140]
    %v122 = vld.sshfl [vmem:[#allocation1 + $0x30] sm:$0xff pattern:$0x73625140]
    %v123 = vld.sshfl [vmem:[#allocation1 + $0x38] sm:$0xff pattern:$0x73625140]
    %v132 = vsel %vm82, %v116, 0.0
    %v133 = vsel %vm82, %v117, 0.0
    %v134 = vadd.f32 %v132, %v133
    %v135 = vsel %vm82, %v118, 0.0
    %v136 = vadd.f32 %v134, %v135
    %v137 = vsel %vm82, %v119, 0.0
    %v138 = vadd.f32 %v136, %v137
    %v139 = vsel %vm82, %v120, 0.0
    %v140 = vadd.f32 %v138, %v139
    %v141 = vsel %vm82, %v121, 0.0
    %v142 = vadd.f32 %v140, %v141
    %v143 = vsel %vm82, %v122, 0.0
    %v144 = vadd.f32 %v142, %v143
    %v145 = vsel %vm82, %v123, 0.0
    %v146 = vadd.f32 %v144, %v145
    %147 = vadd.xlane.f32.xlu0 %v146
    %v148 = vpop.xlane.xlu0 %147
    %v149 = vmul.f32 %v148, 0.0009765625
    %v150 = vadd.f32 %v149, 1e-05
    %v151 = vrsqrt.pop %v150
    %v152 = vmul.f32 %v151, %v150
    %v153 = vmul.f32 %v152, %v151
    %v154 = vmul.f32 0.5, %v153
    %v155 = vsub.f32 1.5, %v154
    %v156 = vmul.f32 %v151, %v155
    %vm157 = vweird.f32 %v150
    %vm158 = vweird.f32 %v151
    %vm159 = vmor %vm157, %vm158
    %v160 = vsel %vm159, %v151, %v156
    %v161 = vmul.f32 %v150, %v160
    %v164 = vunpack.c.l.s4 269488144
    %v165 = vunpack.c.0.s8 %v164
    %v166 = vperm.slane %v160, %v165
    %v168 = vmul.f32 %v107, %v166
    %v169 = vmul.f32 %v108, %v166
    %v170 = vld [vmem:[#allocation5] sm:$0xff]
    %v172 = vperm.slane %v170, 0
    %v173 = vperm.slane %v170, 1
    %v174 = vperm.slane %v170, 2
    %v175 = vperm.slane %v170, 3
    %v176 = vperm.slane %v170, 4
    %v177 = vperm.slane %v170, 5
    %v178 = vperm.slane %v170, 6
    %v179 = vperm.slane %v170, 7
    %v180 = vrot.slane %v173, 6
    %v181 = vrot.slane %v174, 4
    %v182 = vrot.slane %v175, 2
    %v183 = vrot.slane %v177, 6
    %v184 = vrot.slane %v178, 4
    %v185 = vrot.slane %v179, 2
    %v186 = vsel %vm82, %v172, %v180
    %vm187 = vcmask 1045508
    %v188 = vsel %vm187, %v181, %v182
    %vm189 = vcmask 1043456
    %v190 = vsel %vm189, %v186, %v188
    %v191 = vsel %vm82, %v176, %v183
    %v192 = vsel %vm187, %v184, %v185
    %v193 = vsel %vm189, %v191, %v192
    %v196 = vmul.f32 %v168, %v190
    %v197 = vmul.f32 %v169, %v193
    %v198 = vld [vmem:[#allocation7] sm:$0xff]
    %v200 = vperm.slane %v198, 0
    %v201 = vperm.slane %v198, 1
    %v202 = vperm.slane %v198, 2
    %v203 = vperm.slane %v198, 3
    %v204 = vperm.slane %v198, 4
    %v205 = vperm.slane %v198, 5
    %v206 = vperm.slane %v198, 6
    %v207 = vperm.slane %v198, 7
    %v208 = vrot.slane %v201, 6
    %v209 = vrot.slane %v202, 4
    %v210 = vrot.slane %v203, 2
    %v211 = vrot.slane %v205, 6
    %v212 = vrot.slane %v206, 4
    %v213 = vrot.slane %v207, 2
    %v214 = vsel %vm82, %v200, %v208
    %v215 = vsel %vm187, %v209, %v210
    %v216 = vsel %vm189, %v214, %v215
    %v217 = vsel %vm82, %v204, %v211
    %v218 = vsel %vm187, %v212, %v213
    %v219 = vsel %vm189, %v217, %v218
    %v222 = vadd.f32 %v196, %v216
    %v223 = vadd.f32 %v197, %v219
    %224 = vst [vmem:[#allocation8] sm:$0xff] %v222
    %225 = vst [vmem:[#allocation8 + $0x8] sm:$0xff] %v223
    %vm226 = vcmask 1024
    %227 = vst.msk [vmem:[%s4] sm:$0x3] %vm226, %v100
    %228 = vst.msk [vmem:[%s5] sm:$0x3] %vm226, %v161
    // Predicated region
    $region26: #{tpu_custom_call.1} parent=1 // pred_check
      _
    $region27: #{tpu_custom_call.1} parent=1 // pred_check_branch
      %230 = sbr.rel (0) target = $region29
    $region28: #{tpu_custom_call.1} parent=1 // pred_region
      %232 = vsyncadd [#allocation4], 0
      %s234 = sshll.u32 [#allocation8], 4
      %s235 = int_to_ptr.vmem [resolvable:$true] %s234
      %s236 = sshll.u32 %s3, 4
      %s237 = int_to_ptr.hbm [resolvable:$true] %s236
      %239 = dma.vmem_to_hbm [thread:$0]  %s235, 256, %s237, [#allocation4]
    $region29: #{tpu_custom_call.1} parent=1 // pred_fallthru
      _
    // Predicated region
    $region30: #{tpu_custom_call.1} parent=1 // pred_check
      _
    $region31: #{tpu_custom_call.1} parent=1 // pred_check_branch
      %241 = sbr.rel (0) target = $region33
    $region32: #{tpu_custom_call.1} parent=1 // pred_region
      _
    $region33: #{tpu_custom_call.1} parent=1 // pred_fallthru
      _
    // Predicated region
    $region34: #{tpu_custom_call.1} parent=1 // pred_check
      _
    $region35: #{tpu_custom_call.1} parent=1 // pred_check_branch
      %243 = sbr.rel (0) target = $region37
    $region36: #{tpu_custom_call.1} parent=1 // pred_region
      _
    $region37: #{tpu_custom_call.1} parent=1 // pred_fallthru
      _
    // Predicated region
    $region38: #{tpu_custom_call.1} parent=1 // pred_check
      _
    $region39: #{tpu_custom_call.1} parent=1 // pred_check_branch
      %245 = sbr.rel (0) target = $region41
    $region40: #{tpu_custom_call.1} parent=1 // pred_region
      %247 = dma.done [#allocation4], 256
    $region41: #{tpu_custom_call.1} parent=1 // pred_fallthru
      _
    // Predicated region
    $region42: #{tpu_custom_call.1} parent=1 // pred_check
      _
    $region43: #{tpu_custom_call.1} parent=1 // pred_check_branch
      %249 = sbr.rel (0) target = $region45
    $region44: #{tpu_custom_call.1} parent=1 // pred_region
      _
    $region45: #{tpu_custom_call.1} parent=1 // pred_fallthru
      _
    // Predicated region
    $region46: #{tpu_custom_call.1} parent=1 // pred_check
      _
    $region47: #{tpu_custom_call.1} parent=1 // pred_check_branch
      %251 = sbr.rel (0) target = $region49
    $region48: #{tpu_custom_call.1} parent=1 // pred_region
      _
    $region49: #{tpu_custom_call.1} parent=1 // pred_fallthru
      _
    %252 = vsyncpa [#allocation3], 1
    %253 = vsyncpa [#allocation6], 1
    %254 = vsyncpa [#allocation4], 1

</llo_original>
